<compile_context>
chip_gen: v7x
topology: tpu7x:2x2x1
jax: 0.10.0
libtpu: 0.0.40
codegen_flags: <defaults>
</compile_context>

<pallas_src>
import jax
import jax.numpy as jnp
from jax.experimental import pallas as pl
from jax.experimental.pallas import tpu as pltpu


def mlp_edge_kernel(x_ref, w1_ref, b1_ref, w2_ref, b2_ref, o_ref):
    # x_ref  : (2H, TE) stacked [h[src]; h[dst]] activations, edges on lanes
    # w1_ref : (H, 2H)  full W1 (fused: no split into W1a/W1b)
    # b1_ref : (H, 1)
    # w2_ref : (H, 1)   W2.T
    # b2_ref : (1, 1)
    # o_ref  : (1, TE)  lane-dense per-edge scores
    h1 = (jnp.dot(w1_ref[...], x_ref[...], preferred_element_type=jnp.float32)
          + b1_ref[...])                                  # (H, TE) on the MXU, K=2H
    h1 = jnp.maximum(h1, 0.0)
    # Layer 2 (output width 1): VPU multiply + sublane reduction, not MXU.
    s = jnp.sum(h1 * w2_ref[...], axis=0, keepdims=True) + b2_ref[...]  # (1, TE)
    o_ref[...] = s.astype(o_ref.dtype)


def mlp_predictor_scores(h, src, dst, W1, b1, W2, b2, *, tile_e=2048):
    """Compute per-edge MLP scores.

    h   : [N, h_feats]  node features
    src : [E]           int source node index per edge
    dst : [E]           int destination node index per edge
    W1  : [h_feats, 2*h_feats], b1: [h_feats]   (nn.Linear convention: [out,in])
    W2  : [1, h_feats],         b2: [1]
    returns: [E] float32 scores
    """
    E = int(src.shape[0])
    n_nodes, h_feats = h.shape

    # Lane-dense edge tile, multiple of 128.  For moderate/large E keep at
    # least 2 grid steps so the "parallel" axis can be split across the two
    # v7x TensorCores; for tiny E just use one 128-wide tile.
    tile_e = max(128, (int(tile_e) // 128) * 128)
    e_ceil = pl.cdiv(E, 128) * 128
    if e_ceil >= 256:
        half = max(128, (pl.cdiv(e_ceil, 2) // 128) * 128)
        tile_e = min(tile_e, half)
    else:
        tile_e = 128

    e_pad = pl.cdiv(E, tile_e) * tile_e
    pad = e_pad - E
    src_p = jnp.pad(src.astype(jnp.int32), (0, pad))
    dst_p = jnp.pad(dst.astype(jnp.int32), (0, pad))

    # Wrapper-side gather (XLA) on the transposed node table: produces the
    # stacked (2H, E_pad) activation slab directly in the lane-dense layout
    # the kernel consumes.  No [E, 2H] row-major intermediate, no in-kernel
    # one-hot matmul.  Padded edges gather node 0; their scores are sliced off.
    h32 = h.astype(jnp.float32)
    ht = h32.T                                            # (H, N)
    x_t = jnp.concatenate(
        [jnp.take(ht, src_p, axis=1),                     # (H, E_pad) = h[src].T
         jnp.take(ht, dst_p, axis=1)],                    # (H, E_pad) = h[dst].T
        axis=0)                                           # (2H, E_pad)

    w1 = W1.astype(jnp.float32)                           # (H, 2H), kept fused
    b1c = b1.astype(jnp.float32).reshape(h_feats, 1)
    w2c = W2.astype(jnp.float32).T.reshape(h_feats, 1)
    b2r = b2.astype(jnp.float32).reshape(1, 1)

    grid = (e_pad // tile_e,)

    out = pl.pallas_call(
        mlp_edge_kernel,
        out_shape=jax.ShapeDtypeStruct((1, e_pad), jnp.float32),
        grid_spec=pltpu.PrefetchScalarGridSpec(
            num_scalar_prefetch=0,
            grid=grid,
            in_specs=[
                pl.BlockSpec((2 * h_feats, tile_e), lambda i: (0, i)),   # x
                pl.BlockSpec((h_feats, 2 * h_feats), lambda i: (0, 0)),  # W1
                pl.BlockSpec((h_feats, 1), lambda i: (0, 0)),            # b1
                pl.BlockSpec((h_feats, 1), lambda i: (0, 0)),            # W2^T
                pl.BlockSpec((1, 1), lambda i: (0, 0)),                  # b2
            ],
            out_specs=pl.BlockSpec((1, tile_e), lambda i: (0, i)),
        ),
        compiler_params=pltpu.CompilerParams(
            dimension_semantics=("parallel",)),
    )(x_t, w1, b1c, w2c, b2r)

    return out[0, :E]


def _reference(h, src, dst, W1, b1, W2, b2):
    x = jnp.concatenate([h[src], h[dst]], axis=1)
    h1 = jnp.maximum(x @ W1.T + b1, 0.0)
    return (h1 @ W2.T + b2)[:, 0]


if __name__ == "__main__":
    key = jax.random.PRNGKey(0)
    k_h, k_src, k_dst, k_w1, k_b1, k_w2, k_b2 = jax.random.split(key, 7)

    h_feats = 32
    n_nodes = 16
    n_edges = 64

    # Deterministic synthetic node features and edge list.
    h = jax.random.normal(k_h, (n_nodes, h_feats), dtype=jnp.float32)
    src = jax.random.randint(k_src, (n_edges,), 0, n_nodes)
    dst = jax.random.randint(k_dst, (n_edges,), 0, n_nodes)

    # Deterministic parameters (nn.Linear shapes: W [out, in], b [out]).
    W1 = jax.random.normal(k_w1, (h_feats, 2 * h_feats), dtype=jnp.float32) * 0.1
    b1 = jax.random.normal(k_b1, (h_feats,), dtype=jnp.float32) * 0.1
    W2 = jax.random.normal(k_w2, (1, h_feats), dtype=jnp.float32) * 0.1
    b2 = jax.random.normal(k_b2, (1,), dtype=jnp.float32) * 0.1

    scores = mlp_predictor_scores(h, src, dst, W1, b1, W2, b2)
    scores = jax.block_until_ready(scores)

    ref = _reference(h, src, dst, W1, b1, W2, b2)
    assert scores.shape == (n_edges,)
    assert jnp.allclose(scores, ref, atol=1e-4, rtol=1e-4), (
        float(jnp.max(jnp.abs(scores - ref))))

    print("KERNEL_OK")
</pallas_src>

<mosaic_0001>
module attributes {stable_mosaic.version = 11 : i64} {
  func.func @mlp_edge_kernel(%arg0: i32, %arg1: memref<64x128xf32, #tpu.memory_space<vmem>>, %arg2: memref<32x64xf32, #tpu.memory_space<vmem>>, %arg3: memref<32x1xf32, #tpu.memory_space<vmem>>, %arg4: memref<32x1xf32, #tpu.memory_space<vmem>>, %arg5: memref<1x1xf32, #tpu.memory_space<vmem>>, %arg6: memref<1x128xf32, #tpu.memory_space<vmem>>) attributes {dimension_semantics = [#tpu.dimension_semantics<parallel>], iteration_bounds = array<i64: 1>, scalar_prefetch = 0 : i64, scratch_operands = 0 : i64, tpu.core_type = #tpu.core_type<tc>, window_params = [{transform_indices = @transform_0, window_bounds = array<i64: 64, 128>}, {pipeline_mode = #tpu.pipeline_mode<synchronous>, transform_indices = @transform_1, window_bounds = array<i64: 32, 64>}, {pipeline_mode = #tpu.pipeline_mode<synchronous>, transform_indices = @transform_2, window_bounds = array<i64: 32, 1>}, {pipeline_mode = #tpu.pipeline_mode<synchronous>, transform_indices = @transform_3, window_bounds = array<i64: 32, 1>}, {pipeline_mode = #tpu.pipeline_mode<synchronous>, transform_indices = @transform_4, window_bounds = array<i64: 1, 1>}, {transform_indices = @transform_5, window_bounds = array<i64: 1, 128>}]} {
    %c0 = arith.constant 0 : index
    %c0_0 = arith.constant 0 : index
    %0 = vector.load %arg2[%c0, %c0_0] : memref<32x64xf32, #tpu.memory_space<vmem>>, vector<32x64xf32>
    %c0_1 = arith.constant 0 : index
    %c0_2 = arith.constant 0 : index
    %1 = vector.load %arg1[%c0_1, %c0_2] : memref<64x128xf32, #tpu.memory_space<vmem>>, vector<64x128xf32>
    %cst = arith.constant dense<0.000000e+00> : vector<32x128xf32>
    %2 = tpu.matmul %0, %1, %cst {dimension_numbers = #tpu.dot_dimension_numbers<[1], [0], [0], [1], [0, 0, 1, 1], [], []>} : vector<32x64xf32>, vector<64x128xf32>, vector<32x128xf32> -> vector<32x128xf32>
    %c0_3 = arith.constant 0 : index
    %c0_4 = arith.constant 0 : index
    %3 = vector.load %arg3[%c0_3, %c0_4] : memref<32x1xf32, #tpu.memory_space<vmem>>, vector<32x1xf32>
    %4 = vector.broadcast %3 : vector<32x1xf32> to vector<32x128xf32>
    %5 = arith.addf %2, %4 : vector<32x128xf32>
    %cst_5 = arith.constant 0.000000e+00 : f32
    %6 = vector.broadcast %cst_5 : f32 to vector<32x128xf32>
    %7 = arith.maximumf %5, %6 : vector<32x128xf32>
    %c0_6 = arith.constant 0 : index
    %c0_7 = arith.constant 0 : index
    %8 = vector.load %arg4[%c0_6, %c0_7] : memref<32x1xf32, #tpu.memory_space<vmem>>, vector<32x1xf32>
    %9 = vector.broadcast %8 : vector<32x1xf32> to vector<32x128xf32>
    %10 = arith.mulf %7, %9 : vector<32x128xf32>
    %cst_8 = arith.constant dense<0.000000e+00> : vector<128xf32>
    %11 = vector.multi_reduction <add>, %10, %cst_8 [0] : vector<32x128xf32> to vector<128xf32>
    %12 = vector.shape_cast %11 : vector<128xf32> to vector<1x128xf32>
    %c0_9 = arith.constant 0 : index
    %c0_10 = arith.constant 0 : index
    %13 = vector.load %arg5[%c0_9, %c0_10] : memref<1x1xf32, #tpu.memory_space<vmem>>, vector<1x1xf32>
    %14 = vector.broadcast %13 : vector<1x1xf32> to vector<1x128xf32>
    %15 = arith.addf %12, %14 : vector<1x128xf32>
    %c0_11 = arith.constant 0 : index
    %c0_12 = arith.constant 0 : index
    %16 = vector.load %arg6[%c0_11, %c0_12] : memref<1x128xf32, #tpu.memory_space<vmem>>, vector<1x128xf32>
    tpu.vector_store %arg6[%c0_11, %c0_12], %15 {strides = array<i32>} : memref<1x128xf32, #tpu.memory_space<vmem>>, vector<1x128xf32>,
    return
  }
  func.func @transform_0(%arg0: i32) -> (i32, i32) {
    %c0_i32 = arith.constant 0 : i32
    %c0_i32_0 = arith.constant 0 : i32
    return %c0_i32, %arg0 : i32, i32
  }
  func.func @transform_1(%arg0: i32) -> (i32, i32) {
    %c0_i32 = arith.constant 0 : i32
    %c0_i32_0 = arith.constant 0 : i32
    %c0_i32_1 = arith.constant 0 : i32
    return %c0_i32, %c0_i32_0 : i32, i32
  }
  func.func @transform_2(%arg0: i32) -> (i32, i32) {
    %c0_i32 = arith.constant 0 : i32
    %c0_i32_0 = arith.constant 0 : i32
    %c0_i32_1 = arith.constant 0 : i32
    return %c0_i32, %c0_i32_0 : i32, i32
  }
  func.func @transform_3(%arg0: i32) -> (i32, i32) {
    %c0_i32 = arith.constant 0 : i32
    %c0_i32_0 = arith.constant 0 : i32
    %c0_i32_1 = arith.constant 0 : i32
    return %c0_i32, %c0_i32_0 : i32, i32
  }
  func.func @transform_4(%arg0: i32) -> (i32, i32) {
    %c0_i32 = arith.constant 0 : i32
    %c0_i32_0 = arith.constant 0 : i32
    %c0_i32_1 = arith.constant 0 : i32
    return %c0_i32, %c0_i32_0 : i32, i32
  }
  func.func @transform_5(%arg0: i32) -> (i32, i32) {
    %c0_i32 = arith.constant 0 : i32
    %c0_i32_0 = arith.constant 0 : i32
    return %c0_i32, %arg0 : i32, i32
  }
}

</mosaic_0001>

<llo_original>
// kernel: tpu_custom_call.1
$region0: #{tpu_custom_call.1}
  #allocation0 [shape = 'u32[]', space=smem, size = 0x4, offset = 0x4, fixed_abs, tag = 'smem constant byte address 0x4 - core index']
  #allocation1 [shape = 'u32[144,128]{1,0:T(1,128)}', space=vmem, size = 0x12000, scoped, tag = 'internal scratch']
  #allocation2 [shape = 'f32[1,1]{1,0:T(1,128)S(1)}', space=vmem, size = 0x200, scoped, tag = 'scoped memory for tpu_custom_call.1']
  %s0 = inlined_call_operand.vmem [shape: f32[64,128], index: 0, kind: input, shape index: {}]
  %s1 = inlined_call_operand.hbm [shape: f32[32,64], index: 1, kind: input, shape index: {}]
  %s2 = inlined_call_operand.vmem [shape: f32[32,1], index: 2, kind: input, shape index: {}]
  %s3 = inlined_call_operand.vmem [shape: f32[32,1], index: 3, kind: input, shape index: {}]
  %s4 = inlined_call_operand.<no memory space> [shape: f32[1,1], index: 4, kind: input, shape index: {}]
  %s5 = inlined_call_operand.hbm [shape: f32[1,128], index: 5, kind: output, shape index: {}]
  %s6 = sld [smem:[#allocation0]]
  $region34: #{tpu_custom_call.1} parent=0
    _
  %s8 = ssub.s32 1, %s6
  %s9 = scalar_select 0, %s8, %s6
  %v10 = vstv %s4
  %11 = vst [vmem:[#allocation2] sm:$0x1] %v10
  $region1: #{tpu_custom_call.1} parent=0
    #allocation3 [shape = 'u8[16384]{0}', space=vmem, size = 0x4000, scoped, tag = 'input window, operand 1, single buffered']
    #allocation4 [shape = 's32[1]{0}', space=sflag, size = 0x4, scoped, tag = 'scoped memory for tpu_custom_call.1']
    #allocation5 [shape = 's32[1]{0}', space=sflag, size = 0x4, scoped, tag = 'scoped memory for tpu_custom_call.1']
    #allocation6 [shape = 'u8[512]{0}', space=vmem, size = 0x400, scoped, tag = 'output window, operand 0, single buffered']
    %12 = vsyncpa [#allocation4], 0
    %13 = vsyncpa [#allocation5], 0
    // Predicated region
    $region2: #{tpu_custom_call.1} parent=1 // pred_check
      _
    $region3: #{tpu_custom_call.1} parent=1 // pred_check_branch
      %15 = sbr.rel (0) target = $region5
    $region4: #{tpu_custom_call.1} parent=1 // pred_region
      _
    $region5: #{tpu_custom_call.1} parent=1 // pred_fallthru
      _
    // Predicated region
    $region6: #{tpu_custom_call.1} parent=1 // pred_check
      _
    $region7: #{tpu_custom_call.1} parent=1 // pred_check_branch
      %17 = sbr.rel (0) target = $region9
    $region8: #{tpu_custom_call.1} parent=1 // pred_region
      %s19 = ssub.s32 512, 512
      %20 = vsyncadd [#allocation4], %s19
      %s21 = sshll.u32 [#allocation3], 4
      %s22 = int_to_ptr.vmem [resolvable:$true] %s21
      %27 = dma.hbm_to_vmem [thread:$0]  %s1, 512, %s22, [#allocation4], 128, 128, 8
    $region9: #{tpu_custom_call.1} parent=1 // pred_fallthru
      _
    // Predicated region
    $region10: #{tpu_custom_call.1} parent=1 // pred_check
      _
    $region11: #{tpu_custom_call.1} parent=1 // pred_check_branch
      %29 = sbr.rel (0) target = $region13
    $region12: #{tpu_custom_call.1} parent=1 // pred_region
      _
    $region13: #{tpu_custom_call.1} parent=1 // pred_fallthru
      _
    // Predicated region
    $region14: #{tpu_custom_call.1} parent=1 // pred_check
      _
    $region15: #{tpu_custom_call.1} parent=1 // pred_check_branch
      %31 = sbr.rel (0) target = $region17
    $region16: #{tpu_custom_call.1} parent=1 // pred_region
      _
    $region17: #{tpu_custom_call.1} parent=1 // pred_fallthru
      _
    // Predicated region
    $region18: #{tpu_custom_call.1} parent=1 // pred_check
      _
    $region19: #{tpu_custom_call.1} parent=1 // pred_check_branch
      %33 = sbr.rel (0) target = $region21
    $region20: #{tpu_custom_call.1} parent=1 // pred_region
      _
    $region21: #{tpu_custom_call.1} parent=1 // pred_fallthru
      _
    // Predicated region
    $region22: #{tpu_custom_call.1} parent=1 // pred_check
      _
    $region23: #{tpu_custom_call.1} parent=1 // pred_check_branch
      %35 = sbr.rel (0) target = $region25
    $region24: #{tpu_custom_call.1} parent=1 // pred_region
      %36 = dma.done [#allocation4], 512
    $region25: #{tpu_custom_call.1} parent=1 // pred_fallthru
      _
    %v37 = vld [vmem:[#allocation3] sm:$0xff]
    %v38 = vld [vmem:[#allocation3 + $0x8] sm:$0xff]
    %v39 = vld [vmem:[#allocation3 + $0x10] sm:$0xff]
    %v40 = vld [vmem:[#allocation3 + $0x18] sm:$0xff]
    %v41 = vld [vmem:[%s0] sm:$0xff]
    %v42 = vld [vmem:[%s0 + $0x8] sm:$0xff]
    %v43 = vld [vmem:[%s0 + $0x10] sm:$0xff]
    %v44 = vld [vmem:[%s0 + $0x18] sm:$0xff]
    %v45 = vld [vmem:[%s0 + $0x20] sm:$0xff]
    %v46 = vld [vmem:[%s0 + $0x28] sm:$0xff]
    %v47 = vld [vmem:[%s0 + $0x30] sm:$0xff]
    %v48 = vld [vmem:[%s0 + $0x38] sm:$0xff]
    %v49 = vld [vmem:[%s2] sm:$0xff]
    %v50 = vld [vmem:[%s2 + $0x8] sm:$0xff]
    %v51 = vld [vmem:[%s2 + $0x10] sm:$0xff]
    %v52 = vld [vmem:[%s2 + $0x18] sm:$0xff]
    %54 = vset.pattern.permute.xlu0 0
    %55 = vperm.xlu0 %54, %v49
    %v56 = vpop.permute.xlu0 %55
    %59 = vset.pattern.permute.xlu0 0
    %60 = vperm.xlu0 %59, %v50
    %v61 = vpop.permute.xlu0 %60
    %64 = vset.pattern.permute.xlu0 0
    %65 = vperm.xlu0 %64, %v51
    %v66 = vpop.permute.xlu0 %65
    %69 = vset.pattern.permute.xlu0 0
    %70 = vperm.xlu0 %69, %v52
    %v71 = vpop.permute.xlu0 %70
    %vm73 = vcmask 523264
    %v75 = vsel %vm73, %v37, 0
    %v78 = vsel %vm73, %v38, 0
    %v81 = vsel %vm73, %v39, 0
    %v84 = vsel %vm73, %v40, 0
    %86 = vmatprep.subr.mxu0 0.0
    %87 = vmatpush1.msra.mxu0 %v41
    %88 = vmatprep.subr.mxu0 0.0
    %89 = vmatpush1.msra.mxu0 %v42
    %90 = vmatprep.subr.mxu0 0.0
    %91 = vmatpush1.msra.mxu0 %v43
    %92 = vmatprep.subr.mxu0 0.0
    %93 = vmatpush1.msra.mxu0 %v44
    %94 = vmatprep.subr.mxu0 0.0
    %95 = vmatpush1.msra.mxu0 %v45
    %96 = vmatprep.subr.mxu0 0.0
    %97 = vmatpush1.msra.mxu0 %v46
    %98 = vmatprep.subr.mxu0 0.0
    %99 = vmatpush1.msra.mxu0 %v47
    %100 = vmatprep.subr.mxu0 0.0
    %101 = vmatpush1.msra.mxu0 %v48
    %102 = vmatprep.subr.mxu0 0.0
    %103 = vmatpush1.msra.mxu0 0.0
    %104 = vmatprep.subr.mxu0 0.0
    %105 = vmatpush1.msra.mxu0 0.0
    %106 = vmatprep.subr.mxu0 0.0
    %107 = vmatpush1.msra.mxu0 0.0
    %108 = vmatprep.subr.mxu0 0.0
    %109 = vmatpush1.msra.mxu0 0.0
    %110 = vmatprep.subr.mxu0 0.0
    %111 = vmatpush1.msra.mxu0 0.0
    %112 = vmatprep.subr.mxu0 0.0
    %113 = vmatpush1.msra.mxu0 0.0
    %114 = vmatprep.subr.mxu0 0.0
    %115 = vmatpush1.msra.mxu0 0.0
    %116 = vmatprep.subr.mxu0 0.0
    %117 = vmatpush1.msra.mxu0 0.0
    %118 = vmatprep.subr.mxu0 0.0
    %119 = vmatpush1.msra.mxu0 0.0
    %120 = vmatprep.subr.mxu0 0.0
    %121 = vmatpush1.msra.mxu0 0.0
    %122 = vmatprep.subr.mxu0 0.0
    %123 = vmatpush1.msra.mxu0 0.0
    %124 = vmatprep.subr.mxu0 0.0
    %125 = vmatpush1.msra.mxu0 0.0
    %126 = vmatprep.subr.mxu0 0.0
    %127 = vmatpush1.msra.mxu0 0.0
    %128 = vmatprep.subr.mxu0 0.0
    %129 = vmatpush1.msra.mxu0 0.0
    %130 = vmatprep.subr.mxu0 0.0
    %131 = vmatpush1.msra.mxu0 0.0
    %132 = vmatprep.subr.mxu0 0.0
    %133 = vmatpush1.msra.mxu0 0.0
    %134 = vmatprep.subr.mxu0 0.0
    %135 = vmatpush1.msra.mxu0 0.0
    %136 = vmatprep.subr.mxu0 0.0
    %137 = vmatpush1.msra.mxu0 0.0
    %138 = vmatprep.subr.mxu0 0.0
    %139 = vmatpush1.msra.mxu0 0.0
    %140 = vmatprep.subr.mxu0 0.0
    %141 = vmatpush1.msra.mxu0 0.0
    %142 = vmatprep.subr.mxu0 0.0
    %143 = vmatpush1.msra.mxu0 0.0
    %144 = vmatprep.subr.mxu0 0.0
    %145 = vmatpush1.msra.mxu0 0.0
    %146 = vmatprep.subr.mxu0 0.0
    %147 = vmatpush1.msra.mxu0 0.0
    %148 = vmatprep.subr.mxu0 0.0
    %149 = vmatpush1.msra.mxu0 0.0
    %150 = vmatprep.mubr.f32.mxu0 0.0
    %151 = vmatmul.mubr.f32.gmra.mrb[0].mxu0 %v75
    %v152 = vpop.f32.mrb[0].mxu0
    %v153 = vadd.f32 %v56, %v152
    %v154 = vpop.f32.mrb[0].mxu0
    %155 = vmatprep.mubr.f32.mxu0 0.0
    %156 = vmatmul.mubr.f32.gmra.mrb[0].mxu0 %v78
    %v157 = vpop.f32.mrb[0].mxu0
    %v158 = vadd.f32 %v61, %v157
    %v159 = vpop.f32.mrb[0].mxu0
    %160 = vmatprep.mubr.f32.mxu0 0.0
    %161 = vmatmul.mubr.f32.gmra.mrb[0].mxu0 %v81
    %v162 = vpop.f32.mrb[0].mxu0
    %v163 = vadd.f32 %v66, %v162
    %v164 = vpop.f32.mrb[0].mxu0
    %165 = vmatprep.mubr.f32.mxu0 0.0
    %166 = vmatmul.mubr.f32.gmra.mrb[0].mxu0 %v84
    %v167 = vpop.f32.mrb[0].mxu0
    %v168 = vadd.f32 %v71, %v167
    %v169 = vpop.f32.mrb[0].mxu0
    %170 = vdwg.mxu0
    %v171 = vmax.f32 %v153, 0.0
    %v172 = vmax.f32 %v158, 0.0
    %v173 = vmax.f32 %v163, 0.0
    %v174 = vmax.f32 %v168, 0.0
    %v175 = vld [vmem:[%s3] sm:$0xff]
    %v176 = vld [vmem:[%s3 + $0x8] sm:$0xff]
    %v177 = vld [vmem:[%s3 + $0x10] sm:$0xff]
    %v178 = vld [vmem:[%s3 + $0x18] sm:$0xff]
    %180 = vset.pattern.permute.xlu0 0
    %181 = vperm.xlu0 %180, %v175
    %v182 = vpop.permute.xlu0 %181
    %185 = vset.pattern.permute.xlu0 0
    %186 = vperm.xlu0 %185, %v176
    %v187 = vpop.permute.xlu0 %186
    %190 = vset.pattern.permute.xlu0 0
    %191 = vperm.xlu0 %190, %v177
    %v192 = vpop.permute.xlu0 %191
    %195 = vset.pattern.permute.xlu0 0
    %196 = vperm.xlu0 %195, %v178
    %v197 = vpop.permute.xlu0 %196
    %v199 = vmul.f32 %v171, %v182
    %v200 = vmul.f32 %v172, %v187
    %v201 = vmul.f32 %v173, %v192
    %v202 = vmul.f32 %v174, %v197
    %v203 = vadd.f32 %v199, %v200
    %v204 = vadd.f32 %v203, %v201
    %v205 = vadd.f32 %v204, %v202
    %v206 = vrot.slane %v205, 4
    %v207 = vadd.f32 %v205, %v206
    %v208 = vrot.slane %v207, 2
    %v209 = vadd.f32 %v207, %v208
    %v210 = vrot.slane %v209, 1
    %v211 = vadd.f32 %v209, %v210
    %v212 = vld [vmem:[#allocation2] sm:$0x1]
    %214 = vset.pattern.permute.xlu0 0
    %215 = vperm.xlu0 %214, %v212
    %v216 = vpop.permute.xlu0 %215
    %v218 = vlaneseq
    %v219 = vshrl.u32 %v218, 7
    %v220 = vsub.s32 0, %v219
    %v221 = vrot.slane %v216, %v220
    %v222 = vadd.f32 %v211, %v221
    %223 = vst [vmem:[#allocation6] sm:$0x1] %v222
    // Predicated region
    $region26: #{tpu_custom_call.1} parent=1 // pred_check
      _
    $region27: #{tpu_custom_call.1} parent=1 // pred_check_branch
      %225 = sbr.rel (0) target = $region29
    $region28: #{tpu_custom_call.1} parent=1 // pred_region
      %s227 = ssub.s32 16, 16
      %228 = vsyncadd [#allocation5], %s227
      %s230 = sshll.u32 [#allocation6], 4
      %s231 = int_to_ptr.vmem [resolvable:$true] %s230
      %233 = dma.vmem_to_hbm [thread:$0]  %s231, 16, %s5, [#allocation5]
    $region29: #{tpu_custom_call.1} parent=1 // pred_fallthru
      _
    // Predicated region
    $region30: #{tpu_custom_call.1} parent=1 // pred_check
      _
    $region31: #{tpu_custom_call.1} parent=1 // pred_check_branch
      %235 = sbr.rel (0) target = $region33
    $region32: #{tpu_custom_call.1} parent=1 // pred_region
      %236 = dma.done [#allocation5], 16
    $region33: #{tpu_custom_call.1} parent=1 // pred_fallthru
      _
    %237 = vsyncpa [#allocation4], 1
    %238 = vsyncpa [#allocation5], 1

</llo_original>
